<compile_context>
chip_gen: v7x
topology: tpu7x:2x2x1
jax: 0.10.0
libtpu: 0.0.40
codegen_flags: <defaults>
</compile_context>

<pallas_src>
import functools

import numpy as np
import jax
import jax.numpy as jnp
from jax import lax
from jax.experimental import pallas as pl
from jax.experimental.pallas import tpu as pltpu

LANE = 128
SUB = 16                      # per-sample row blocks padded to a multiple of 16
                              # (aligned for both f32 (8,128) and bf16 (16,128) tiles)
COMPUTE_DTYPE = jnp.bfloat16  # MXU input dtype; accumulation always f32


def _round_up(x, m):
    return ((x + m - 1) // m) * m


# ----------------------------------------------------------------------------
# Fused Pallas kernel (whole forward in one call, full-array VMEM blocks)
# ----------------------------------------------------------------------------

def _make_fused_kernel(N, LAP, LP, COP, n_ks, L_valids, La_valid, compute_dtype):
    """Build the fused kernel for a static config (batch, per-branch lengths)."""

    def kernel(a_patch_ref, w3_ref, b3_ref, wfa_ref, bfa_ref,
               patch_ref, w12_ref, b1_ref, b2_ref,
               wfc_ref, bfc_ref,
               logit_ref, xcat_ref, *y_refs):
        neg_inf = jnp.float32(-jnp.inf)

        # ---- aspect branch: relu(conv3(aspect)) -> masked max-pool -> fc_aspect gate
        ap = a_patch_ref[...].reshape(N * LAP, a_patch_ref.shape[-1])
        a = jnp.dot(ap, w3_ref[...], preferred_element_type=jnp.float32)
        a = a.reshape(N, LAP, COP) + b3_ref[...].reshape(1, 1, COP)
        a = jnp.maximum(a, 0.0)                                   # (N, LAP, COP)
        a_rows = lax.broadcasted_iota(jnp.int32, (N, LAP, COP), 1)
        a = jnp.where(a_rows < La_valid, a, neg_inf)              # mask padded rows
        pooled_a = jnp.max(a, axis=1)                             # (N, COP)
        gate = jnp.dot(pooled_a.astype(compute_dtype), wfa_ref[...],
                       preferred_element_type=jnp.float32) + bfa_ref[...]  # (N, COP)

        # ---- all gated-conv branches: ONE shared patch matrix, ONE fused matmul
        p2 = patch_ref[...].reshape(N * LP, patch_ref.shape[-1])
        conv_all = jnp.dot(p2, w12_ref[...],
                           preferred_element_type=jnp.float32)    # (N*LP, 2*n_ks*COP)
        conv_all = conv_all.reshape(N, LP, 2 * n_ks * COP)

        rows = lax.broadcasted_iota(jnp.int32, (N, LP, COP), 1)
        pooled = []
        for ki in range(n_ks):
            c1 = conv_all[:, :, (2 * ki) * COP:(2 * ki + 1) * COP]      # conv1
            c2 = conv_all[:, :, (2 * ki + 1) * COP:(2 * ki + 2) * COP]  # conv2
            b1 = b1_ref[:, ki * COP:(ki + 1) * COP].reshape(1, 1, COP)
            gb2 = (gate + b2_ref[:, ki * COP:(ki + 1) * COP])[:, None, :]  # (N,1,COP)
            x = jnp.tanh(c1 + b1)                                  # tanh(conv1 + b1)
            y = jnp.maximum(c2 + gb2, 0.0)                         # relu(conv2 + gate + b2)
            y_refs[ki][...] = y                                    # aligned full-slab store
            g = jnp.where(rows < L_valids[ki], x * y, neg_inf)     # mask invalid windows
            pooled.append(jnp.max(g, axis=1))                      # (N, COP)

        # ---- classifier (Dropout = identity at inference) ----
        x_cat = jnp.concatenate(pooled, axis=1)                    # (N, n_ks*COP), lane-aligned
        xcat_ref[...] = x_cat
        logit_ref[...] = jnp.dot(x_cat.astype(compute_dtype), wfc_ref[...],
                                 preferred_element_type=jnp.float32) + bfc_ref[...]

    return kernel


def fused_forward_call(a_patches, w3, b3, wfa, bfa,
                       patches, w12_all, b1_all, b2_all, w_fc1, b_fc1,
                       N, LAP, LP, COP, CP, n_ks, L_valids, La_valid, compute_dtype):
    """Single grid-less pallas_call; full-array VMEM blocks (working set << VMEM)."""
    kernel = _make_fused_kernel(N, LAP, LP, COP, n_ks, L_valids, La_valid, compute_dtype)
    out_shape = (
        jax.ShapeDtypeStruct((N, CP), jnp.float32),               # logits (lane-padded)
        jax.ShapeDtypeStruct((N, n_ks * COP), jnp.float32),       # x_cat  (lane-padded)
    ) + tuple(jax.ShapeDtypeStruct((N, LP, COP), jnp.float32)     # y per branch (padded slab)
              for _ in range(n_ks))
    return pl.pallas_call(
        kernel,
        out_shape=out_shape,
        compiler_params=pltpu.CompilerParams(vmem_limit_bytes=32 * 1024 * 1024),
    )(a_patches, w3, b3, wfa, bfa, patches, w12_all, b1_all, b2_all, w_fc1, b_fc1)


# ----------------------------------------------------------------------------
# Glue: im2col, weight packing (padding to lane/sublane-dense layouts)
# ----------------------------------------------------------------------------

def _pad_to(x, shape):
    pads = [(0, t - s) for s, t in zip(x.shape, shape)]
    return jnp.pad(x, pads)


def im2col_padded(x, k, n_win, lp, kdp, dtype):
    """x (N, L', D) -> (N, lp, kdp); row j = concat_t x[:, j+t, :] for t<k; padding is zero."""
    cols = jnp.concatenate([x[:, j:j + n_win, :] for j in range(k)], axis=-1)  # (N, n_win, k*D)
    cols = jnp.pad(cols, ((0, 0), (0, lp - n_win), (0, kdp - cols.shape[-1])))
    return cols.astype(dtype)


def conv_weight_to_mat(w, kdp, cop):
    """PyTorch Conv1d weight (Co, D, K) -> zero-padded (kdp, cop) matmul matrix."""
    co, d, k = w.shape
    m = jnp.transpose(w, (2, 1, 0)).reshape(k * d, co)
    return _pad_to(m, (kdp, cop))


def make_raw_params(key, V, D, A, Co, Ks, C):
    """Parameters in plain (PyTorch-equivalent) layouts."""
    keys = jax.random.split(key, 10 + 4 * len(Ks))
    it = iter(keys)
    p = {
        "embed": jax.random.normal(next(it), (V, D), jnp.float32) * 0.1,
        "aspect_embed": jax.random.normal(next(it), (A, D), jnp.float32) * 0.1,
        "w1": [], "b1": [], "w2": [], "b2": [],
    }
    for K in Ks:
        p["w1"].append(jax.random.normal(next(it), (Co, D, K), jnp.float32) * 0.05)
        p["b1"].append(jax.random.normal(next(it), (Co,), jnp.float32) * 0.05)
        p["w2"].append(jax.random.normal(next(it), (Co, D, K), jnp.float32) * 0.05)
        p["b2"].append(jax.random.normal(next(it), (Co,), jnp.float32) * 0.05)
    p["w3"] = jax.random.normal(next(it), (Co, D, 3), jnp.float32) * 0.05
    p["b3"] = jax.random.normal(next(it), (Co,), jnp.float32) * 0.05
    p["wfa"] = jax.random.normal(next(it), (Co, Co), jnp.float32) * 0.05   # (in, out)
    p["bfa"] = jax.random.normal(next(it), (Co,), jnp.float32) * 0.05
    p["w_fc1"] = jax.random.normal(next(it), (len(Ks) * Co, C), jnp.float32) * 0.05
    p["b_fc1"] = jax.random.normal(next(it), (C,), jnp.float32) * 0.05
    return p


def pack_params(p, Ks, D, Co, C, compute_dtype):
    """Repack raw params into lane-dense, zero-padded kernel layouts (bf16 weights)."""
    COP, CP = _round_up(Co, LANE), _round_up(C, LANE)
    Kmax = max(Ks)
    KDP = _round_up(Kmax * D, LANE)
    KD3P = _round_up(3 * D, LANE)

    w12_cols, b1_cols, b2_cols = [], [], []
    for ki, K in enumerate(Ks):
        # K<Kmax weights occupy rows 0..K*D-1; the remaining rows are zero so the
        # shared Kmax-window patch contracts to the correct K-window result.
        w12_cols.append(conv_weight_to_mat(p["w1"][ki], KDP, COP))
        w12_cols.append(conv_weight_to_mat(p["w2"][ki], KDP, COP))
        b1_cols.append(_pad_to(p["b1"][ki][None, :], (1, COP)))
        b2_cols.append(_pad_to(p["b2"][ki][None, :], (1, COP)))

    kp = {
        "w12_all": jnp.concatenate(w12_cols, axis=1).astype(compute_dtype),  # (KDP, 2*n_ks*COP)
        "b1_all": jnp.concatenate(b1_cols, axis=1),                          # (1, n_ks*COP) f32
        "b2_all": jnp.concatenate(b2_cols, axis=1),                          # (1, n_ks*COP) f32
        "w3": conv_weight_to_mat(p["w3"], KD3P, COP).astype(compute_dtype),
        "b3": _pad_to(p["b3"][None, :], (1, COP)),
        "wfa": _pad_to(p["wfa"], (COP, COP)).astype(compute_dtype),
        "bfa": _pad_to(p["bfa"][None, :], (1, COP)),
    }
    # fc1 rows remapped to the lane-padded x_cat layout [K0: 0..COP-1][K1: COP..2COP-1]...
    wfc = jnp.zeros((len(Ks) * COP, CP), jnp.float32)
    for ki in range(len(Ks)):
        wfc = wfc.at[ki * COP: ki * COP + Co, :C].set(
            p["w_fc1"][ki * Co:(ki + 1) * Co, :])
    kp["w_fc1"] = wfc.astype(compute_dtype)
    kp["b_fc1"] = _pad_to(p["b_fc1"][None, :], (1, CP))
    return kp


# ----------------------------------------------------------------------------
# Full forward (glue: embeddings / shared im2col / unpadding around the kernel)
# ----------------------------------------------------------------------------

def cnn_gate_aspect_forward(raw, kp, feature_ids, aspect_ids, Ks, Co, C,
                            compute_dtype=COMPUTE_DTYPE):
    n_ks = len(Ks)
    COP, CP = _round_up(Co, LANE), _round_up(C, LANE)
    N, L = feature_ids.shape
    La = aspect_ids.shape[1]
    D = raw["embed"].shape[1]
    Kmax, Kmin = max(Ks), min(Ks)
    KDP = _round_up(Kmax * D, LANE)
    KD3P = _round_up(3 * D, LANE)

    emb = raw["embed"][feature_ids]                  # (N, L, D)
    a_emb = raw["aspect_embed"][aspect_ids]          # (N, La, D)

    # Shared im2col at K = Kmax for ALL gated-conv branches: the K-window at
    # position j is the first K*D columns of the Kmax-window at j.  Pad the
    # sequence with Kmax-Kmin zero tokens so every Kmin-window exists; tail
    # windows that are invalid for longer K are masked inside the kernel.
    L_valids = tuple(L - K + 1 for K in Ks)
    L_shared = max(L_valids)
    LP = _round_up(L_shared, SUB)
    emb_p = jnp.pad(emb, ((0, 0), (0, Kmax - Kmin), (0, 0)))
    patches = im2col_padded(emb_p, Kmax, L_shared, LP, KDP, compute_dtype)   # (N, LP, KDP)

    # Aspect conv: Conv1d(D, Co, 3, padding=1) -> La valid output positions.
    LAP = _round_up(La, SUB)
    a_pad = jnp.pad(a_emb, ((0, 0), (1, 1), (0, 0)))
    a_patches = im2col_padded(a_pad, 3, La, LAP, KD3P, compute_dtype)        # (N, LAP, KD3P)

    outs = fused_forward_call(a_patches, kp["w3"], kp["b3"], kp["wfa"], kp["bfa"],
                              patches, kp["w12_all"], kp["b1_all"], kp["b2_all"],
                              kp["w_fc1"], kp["b_fc1"],
                              N, LAP, LP, COP, CP, n_ks, L_valids, La, compute_dtype)
    logit_p, xcat_p = outs[0], outs[1]
    y_pads = outs[2:]

    logit = logit_p[:, :C]
    x_cat = jnp.concatenate(
        [xcat_p[:, ki * COP: ki * COP + Co] for ki in range(n_ks)], axis=1)
    y_list = [jnp.transpose(y_pads[ki][:, :L_valids[ki], :Co], (0, 2, 1))    # (N, Co, L_out)
              for ki in range(n_ks)]
    return logit, x_cat, y_list


# ----------------------------------------------------------------------------
# Pure-JAX reference (for a numerical sanity check)
# ----------------------------------------------------------------------------

def reference_forward(p, feature_ids, aspect_ids, Ks):
    hp = jax.lax.Precision.HIGHEST
    emb = p["embed"][feature_ids]
    a_emb = p["aspect_embed"][aspect_ids]

    def conv1d(x, w, b, pad=0):
        if pad:
            x = jnp.pad(x, ((0, 0), (pad, pad), (0, 0)))
        n, l, d = x.shape
        co, _, k = w.shape
        l_out = l - k + 1
        cols = jnp.concatenate([x[:, j:j + l_out, :] for j in range(k)], axis=-1)
        wm = jnp.transpose(w, (2, 1, 0)).reshape(k * d, co)
        return jnp.einsum("nlf,fc->nlc", cols, wm, precision=hp) + b

    aa = jax.nn.relu(conv1d(a_emb, p["w3"], p["b3"], pad=1))       # (N, La, Co)
    aspect_v = jnp.max(aa, axis=1)                                 # (N, Co)
    gate = jnp.dot(aspect_v, p["wfa"], precision=hp) + p["bfa"]    # (N, Co)

    pooled, y_list = [], []
    for ki, K in enumerate(Ks):
        x = jnp.tanh(conv1d(emb, p["w1"][ki], p["b1"][ki]))
        y = jax.nn.relu(conv1d(emb, p["w2"][ki], p["b2"][ki]) + gate[:, None, :])
        g = x * y
        pooled.append(jnp.max(g, axis=1))
        y_list.append(jnp.transpose(y, (0, 2, 1)))
    x_cat = jnp.concatenate(pooled, axis=1)
    logit = jnp.dot(x_cat, p["w_fc1"], precision=hp) + p["b_fc1"]
    return logit, x_cat, y_list


# ----------------------------------------------------------------------------
# Driver
# ----------------------------------------------------------------------------

if __name__ == "__main__":
    # V=embed_num, D=embed_dim(=aspect_embed_dim), C=class_num, A=aspect_num,
    # Co=kernel_num (=100, forced by fc_aspect=Linear(100, Co)), Ks=kernel_sizes.
    V, D, C, A, Co = 50, 32, 3, 10, 100
    Ks = (3, 4)
    N, L, La = 2, 16, 6

    key = jax.random.PRNGKey(0)
    pkey, fkey, akey = jax.random.split(key, 3)
    raw = make_raw_params(pkey, V, D, A, Co, Ks, C)
    kp = pack_params(raw, Ks, D, Co, C, COMPUTE_DTYPE)

    feature_ids = jax.random.randint(fkey, (N, L), 0, V, dtype=jnp.int32)
    aspect_ids = jax.random.randint(akey, (N, La), 0, A, dtype=jnp.int32)

    fwd = jax.jit(functools.partial(cnn_gate_aspect_forward, Ks=Ks, Co=Co, C=C))
    logit, x_cat, y_list = fwd(raw, kp, feature_ids, aspect_ids)
    jax.block_until_ready((logit, x_cat, y_list))

    # Shape checks (match PyTorch forward outputs).
    assert logit.shape == (N, C)
    assert x_cat.shape == (N, len(Ks) * Co)
    for ki, K in enumerate(Ks):
        assert y_list[ki].shape == (N, Co, L - K + 1)

    # Numerical sanity check against a pure-JAX f32 reference.
    # (bf16 MXU inputs with f32 accumulation -> slightly looser tolerance.)
    ref_logit, ref_xcat, ref_y = reference_forward(raw, feature_ids, aspect_ids, Ks)
    tol = 2e-2 if COMPUTE_DTYPE == jnp.bfloat16 else 5e-3
    np.testing.assert_allclose(np.asarray(logit), np.asarray(ref_logit), rtol=tol, atol=tol)
    np.testing.assert_allclose(np.asarray(x_cat), np.asarray(ref_xcat), rtol=tol, atol=tol)
    for ki in range(len(Ks)):
        np.testing.assert_allclose(np.asarray(y_list[ki]), np.asarray(ref_y[ki]),
                                   rtol=tol, atol=tol)

    print("KERNEL_OK")
</pallas_src>

<mosaic_0001>
module attributes {stable_mosaic.version = 11 : i64} {
  func.func @kernel(%arg0: memref<2x16x128xbf16, #tpu.memory_space<vmem>>, %arg1: memref<128x128xbf16, #tpu.memory_space<vmem>>, %arg2: memref<1x128xf32, #tpu.memory_space<vmem>>, %arg3: memref<128x128xbf16, #tpu.memory_space<vmem>>, %arg4: memref<1x128xf32, #tpu.memory_space<vmem>>, %arg5: memref<2x16x128xbf16, #tpu.memory_space<vmem>>, %arg6: memref<128x512xbf16, #tpu.memory_space<vmem>>, %arg7: memref<1x256xf32, #tpu.memory_space<vmem>>, %arg8: memref<1x256xf32, #tpu.memory_space<vmem>>, %arg9: memref<256x128xbf16, #tpu.memory_space<vmem>>, %arg10: memref<1x128xf32, #tpu.memory_space<vmem>>, %arg11: memref<2x128xf32, #tpu.memory_space<vmem>>, %arg12: memref<2x256xf32, #tpu.memory_space<vmem>>, %arg13: memref<2x16x128xf32, #tpu.memory_space<vmem>>, %arg14: memref<2x16x128xf32, #tpu.memory_space<vmem>>) attributes {dimension_semantics = [], scalar_prefetch = 0 : i64, scratch_operands = 0 : i64, tpu.core_type = #tpu.core_type<tc>} {
    %c0 = arith.constant 0 : index
    %c0_0 = arith.constant 0 : index
    %c0_1 = arith.constant 0 : index
    %0 = vector.load %arg0[%c0, %c0_0, %c0_1] : memref<2x16x128xbf16, #tpu.memory_space<vmem>>, vector<2x16x128xbf16>
    %1 = vector.shape_cast %0 : vector<2x16x128xbf16> to vector<32x128xbf16>
    %c0_2 = arith.constant 0 : index
    %c0_3 = arith.constant 0 : index
    %2 = vector.load %arg1[%c0_2, %c0_3] : memref<128x128xbf16, #tpu.memory_space<vmem>>, vector<128x128xbf16>
    %cst = arith.constant dense<0.000000e+00> : vector<32x128xf32>
    %3 = tpu.matmul %1, %2, %cst {dimension_numbers = #tpu.dot_dimension_numbers<[1], [0], [0], [1], [0, 0, 1, 1], [], []>} : vector<32x128xbf16>, vector<128x128xbf16>, vector<32x128xf32> -> vector<32x128xf32>
    %4 = vector.shape_cast %3 : vector<32x128xf32> to vector<2x16x128xf32>
    %c0_4 = arith.constant 0 : index
    %c0_5 = arith.constant 0 : index
    %5 = vector.load %arg2[%c0_4, %c0_5] : memref<1x128xf32, #tpu.memory_space<vmem>>, vector<1x128xf32>
    %6 = vector.shape_cast %5 : vector<1x128xf32> to vector<1x1x128xf32>
    %7 = vector.broadcast %6 : vector<1x1x128xf32> to vector<2x16x128xf32>
    %8 = arith.addf %4, %7 : vector<2x16x128xf32>
    %cst_6 = arith.constant 0.000000e+00 : f32
    %9 = vector.broadcast %cst_6 : f32 to vector<2x16x128xf32>
    %10 = arith.maximumf %8, %9 : vector<2x16x128xf32>
    %11 = tpu.iota {dimensions = array<i32: 1>} : vector<2x16x128xi32>
    %c6_i32 = arith.constant 6 : i32
    %12 = vector.broadcast %c6_i32 : i32 to vector<2x16x128xi32>
    %13 = arith.cmpi slt, %11, %12 : vector<2x16x128xi32>
    %cst_7 = arith.constant 0xFF800000 : f32
    %14 = vector.broadcast %cst_7 : f32 to vector<2x16x128xf32>
    %15 = arith.select %13, %10, %14 : vector<2x16x128xi1>, vector<2x16x128xf32>
    %cst_8 = arith.constant dense<0xFF800000> : vector<2x128xf32>
    %16 = vector.multi_reduction <maximumf>, %15, %cst_8 [1] : vector<2x16x128xf32> to vector<2x128xf32>
    %17 = arith.truncf %16 : vector<2x128xf32> to vector<2x128xbf16>
    %c0_9 = arith.constant 0 : index
    %c0_10 = arith.constant 0 : index
    %18 = vector.load %arg3[%c0_9, %c0_10] : memref<128x128xbf16, #tpu.memory_space<vmem>>, vector<128x128xbf16>
    %cst_11 = arith.constant dense<0.000000e+00> : vector<2x128xf32>
    %19 = tpu.matmul %17, %18, %cst_11 {dimension_numbers = #tpu.dot_dimension_numbers<[1], [0], [0], [1], [0, 0, 1, 1], [], []>} : vector<2x128xbf16>, vector<128x128xbf16>, vector<2x128xf32> -> vector<2x128xf32>
    %c0_12 = arith.constant 0 : index
    %c0_13 = arith.constant 0 : index
    %20 = vector.load %arg4[%c0_12, %c0_13] : memref<1x128xf32, #tpu.memory_space<vmem>>, vector<1x128xf32>
    %21 = vector.broadcast %20 : vector<1x128xf32> to vector<2x128xf32>
    %22 = arith.addf %19, %21 : vector<2x128xf32>
    %c0_14 = arith.constant 0 : index
    %c0_15 = arith.constant 0 : index
    %c0_16 = arith.constant 0 : index
    %23 = vector.load %arg5[%c0_14, %c0_15, %c0_16] : memref<2x16x128xbf16, #tpu.memory_space<vmem>>, vector<2x16x128xbf16>
    %24 = vector.shape_cast %23 : vector<2x16x128xbf16> to vector<32x128xbf16>
    %c0_17 = arith.constant 0 : index
    %c0_18 = arith.constant 0 : index
    %25 = vector.load %arg6[%c0_17, %c0_18] : memref<128x512xbf16, #tpu.memory_space<vmem>>, vector<128x512xbf16>
    %cst_19 = arith.constant dense<0.000000e+00> : vector<32x512xf32>
    %26 = tpu.matmul %24, %25, %cst_19 {dimension_numbers = #tpu.dot_dimension_numbers<[1], [0], [0], [1], [0, 0, 1, 1], [], []>} : vector<32x128xbf16>, vector<128x512xbf16>, vector<32x512xf32> -> vector<32x512xf32>
    %27 = vector.shape_cast %26 : vector<32x512xf32> to vector<2x16x512xf32>
    %28 = tpu.iota {dimensions = array<i32: 1>} : vector<2x16x128xi32>
    %29 = vector.extract_strided_slice %27 {offsets = [0, 0, 0], sizes = [2, 16, 128], strides = [1, 1, 1]} : vector<2x16x512xf32> to vector<2x16x128xf32>
    %30 = vector.extract_strided_slice %27 {offsets = [0, 0, 128], sizes = [2, 16, 128], strides = [1, 1, 1]} : vector<2x16x512xf32> to vector<2x16x128xf32>
    %c0_20 = arith.constant 0 : index
    %c0_21 = arith.constant 0 : index
    %31 = vector.load %arg7[%c0_20, %c0_21] : memref<1x256xf32, #tpu.memory_space<vmem>>, vector<1x128xf32>
    %32 = vector.shape_cast %31 : vector<1x128xf32> to vector<1x1x128xf32>
    %c0_22 = arith.constant 0 : index
    %c0_23 = arith.constant 0 : index
    %33 = vector.load %arg8[%c0_22, %c0_23] : memref<1x256xf32, #tpu.memory_space<vmem>>, vector<1x128xf32>
    %34 = vector.broadcast %33 : vector<1x128xf32> to vector<2x128xf32>
    %35 = arith.addf %22, %34 : vector<2x128xf32>
    %36 = vector.shape_cast %35 : vector<2x128xf32> to vector<2x1x128xf32>
    %37 = vector.broadcast %32 : vector<1x1x128xf32> to vector<2x16x128xf32>
    %38 = arith.addf %29, %37 : vector<2x16x128xf32>
    %39 = math.tanh %38 : vector<2x16x128xf32>
    %40 = vector.broadcast %36 : vector<2x1x128xf32> to vector<2x16x128xf32>
    %41 = arith.addf %30, %40 : vector<2x16x128xf32>
    %cst_24 = arith.constant 0.000000e+00 : f32
    %42 = vector.broadcast %cst_24 : f32 to vector<2x16x128xf32>
    %43 = arith.maximumf %41, %42 : vector<2x16x128xf32>
    %c0_25 = arith.constant 0 : index
    %c0_26 = arith.constant 0 : index
    %c0_27 = arith.constant 0 : index
    %44 = vector.load %arg13[%c0_25, %c0_26, %c0_27] : memref<2x16x128xf32, #tpu.memory_space<vmem>>, vector<2x16x128xf32>
    tpu.vector_store %arg13[%c0_25, %c0_26, %c0_27], %43 {strides = array<i32>} : memref<2x16x128xf32, #tpu.memory_space<vmem>>, vector<2x16x128xf32>,
    %c14_i32 = arith.constant 14 : i32
    %45 = vector.broadcast %c14_i32 : i32 to vector<2x16x128xi32>
    %46 = arith.cmpi slt, %28, %45 : vector<2x16x128xi32>
    %47 = arith.mulf %39, %43 : vector<2x16x128xf32>
    %cst_28 = arith.constant 0xFF800000 : f32
    %48 = vector.broadcast %cst_28 : f32 to vector<2x16x128xf32>
    %49 = arith.select %46, %47, %48 : vector<2x16x128xi1>, vector<2x16x128xf32>
    %cst_29 = arith.constant dense<0xFF800000> : vector<2x128xf32>
    %50 = vector.multi_reduction <maximumf>, %49, %cst_29 [1] : vector<2x16x128xf32> to vector<2x128xf32>
    %51 = vector.extract_strided_slice %27 {offsets = [0, 0, 256], sizes = [2, 16, 128], strides = [1, 1, 1]} : vector<2x16x512xf32> to vector<2x16x128xf32>
    %52 = vector.extract_strided_slice %27 {offsets = [0, 0, 384], sizes = [2, 16, 128], strides = [1, 1, 1]} : vector<2x16x512xf32> to vector<2x16x128xf32>
    %c0_30 = arith.constant 0 : index
    %c128 = arith.constant 128 : index
    %53 = vector.load %arg7[%c0_30, %c128] : memref<1x256xf32, #tpu.memory_space<vmem>>, vector<1x128xf32>
    %54 = vector.shape_cast %53 : vector<1x128xf32> to vector<1x1x128xf32>
    %c0_31 = arith.constant 0 : index
    %c128_32 = arith.constant 128 : index
    %55 = vector.load %arg8[%c0_31, %c128_32] : memref<1x256xf32, #tpu.memory_space<vmem>>, vector<1x128xf32>
    %56 = vector.broadcast %55 : vector<1x128xf32> to vector<2x128xf32>
    %57 = arith.addf %22, %56 : vector<2x128xf32>
    %58 = vector.shape_cast %57 : vector<2x128xf32> to vector<2x1x128xf32>
    %59 = vector.broadcast %54 : vector<1x1x128xf32> to vector<2x16x128xf32>
    %60 = arith.addf %51, %59 : vector<2x16x128xf32>
    %61 = math.tanh %60 : vector<2x16x128xf32>
    %62 = vector.broadcast %58 : vector<2x1x128xf32> to vector<2x16x128xf32>
    %63 = arith.addf %52, %62 : vector<2x16x128xf32>
    %cst_33 = arith.constant 0.000000e+00 : f32
    %64 = vector.broadcast %cst_33 : f32 to vector<2x16x128xf32>
    %65 = arith.maximumf %63, %64 : vector<2x16x128xf32>
    %c0_34 = arith.constant 0 : index
    %c0_35 = arith.constant 0 : index
    %c0_36 = arith.constant 0 : index
    %66 = vector.load %arg14[%c0_34, %c0_35, %c0_36] : memref<2x16x128xf32, #tpu.memory_space<vmem>>, vector<2x16x128xf32>
    tpu.vector_store %arg14[%c0_34, %c0_35, %c0_36], %65 {strides = array<i32>} : memref<2x16x128xf32, #tpu.memory_space<vmem>>, vector<2x16x128xf32>,
    %c13_i32 = arith.constant 13 : i32
    %67 = vector.broadcast %c13_i32 : i32 to vector<2x16x128xi32>
    %68 = arith.cmpi slt, %28, %67 : vector<2x16x128xi32>
    %69 = arith.mulf %61, %65 : vector<2x16x128xf32>
    %cst_37 = arith.constant 0xFF800000 : f32
    %70 = vector.broadcast %cst_37 : f32 to vector<2x16x128xf32>
    %71 = arith.select %68, %69, %70 : vector<2x16x128xi1>, vector<2x16x128xf32>
    %cst_38 = arith.constant dense<0xFF800000> : vector<2x128xf32>
    %72 = vector.multi_reduction <maximumf>, %71, %cst_38 [1] : vector<2x16x128xf32> to vector<2x128xf32>
    %73 = tpu.concatenate %50, %72 in 1 : vector<2x128xf32>, vector<2x128xf32> -> vector<2x256xf32>
    %c0_39 = arith.constant 0 : index
    %c0_40 = arith.constant 0 : index
    %74 = vector.load %arg12[%c0_39, %c0_40] : memref<2x256xf32, #tpu.memory_space<vmem>>, vector<2x256xf32>
    tpu.vector_store %arg12[%c0_39, %c0_40], %73 {strides = array<i32>} : memref<2x256xf32, #tpu.memory_space<vmem>>, vector<2x256xf32>,
    %75 = arith.truncf %73 : vector<2x256xf32> to vector<2x256xbf16>
    %c0_41 = arith.constant 0 : index
    %c0_42 = arith.constant 0 : index
    %76 = vector.load %arg9[%c0_41, %c0_42] : memref<256x128xbf16, #tpu.memory_space<vmem>>, vector<256x128xbf16>
    %cst_43 = arith.constant dense<0.000000e+00> : vector<2x128xf32>
    %77 = tpu.matmul %75, %76, %cst_43 {dimension_numbers = #tpu.dot_dimension_numbers<[1], [0], [0], [1], [0, 0, 1, 1], [], []>} : vector<2x256xbf16>, vector<256x128xbf16>, vector<2x128xf32> -> vector<2x128xf32>
    %c0_44 = arith.constant 0 : index
    %c0_45 = arith.constant 0 : index
    %78 = vector.load %arg10[%c0_44, %c0_45] : memref<1x128xf32, #tpu.memory_space<vmem>>, vector<1x128xf32>
    %79 = vector.broadcast %78 : vector<1x128xf32> to vector<2x128xf32>
    %80 = arith.addf %77, %79 : vector<2x128xf32>
    %c0_46 = arith.constant 0 : index
    %c0_47 = arith.constant 0 : index
    %81 = vector.load %arg11[%c0_46, %c0_47] : memref<2x128xf32, #tpu.memory_space<vmem>>, vector<2x128xf32>
    tpu.vector_store %arg11[%c0_46, %c0_47], %80 {strides = array<i32>} : memref<2x128xf32, #tpu.memory_space<vmem>>, vector<2x128xf32>,
    return
  }
}

</mosaic_0001>

<llo_original>
// kernel: cnn_gate_aspect_forward.1
$region0: #{cnn_gate_aspect_forward.1}
  #allocation0 [shape = 'u32[]', space=smem, size = 0x4, offset = 0x4, fixed_abs, tag = 'smem constant byte address 0x4 - core index']
  #allocation1 [shape = 'u32[144,128]{1,0:T(1,128)}', space=vmem, size = 0x12000, scoped, tag = 'internal scratch']
  %s0 = inlined_call_operand.vmem [shape: bf16[2,16,128], index: 0, kind: input, shape index: {}]
  %s1 = inlined_call_operand.vmem [shape: bf16[128,128], index: 1, kind: input, shape index: {}]
  %s2 = inlined_call_operand.vmem [shape: f32[1,128], index: 2, kind: input, shape index: {}]
  %s3 = inlined_call_operand.vmem [shape: bf16[128,128], index: 3, kind: input, shape index: {}]
  %s4 = inlined_call_operand.vmem [shape: f32[1,128], index: 4, kind: input, shape index: {}]
  %s5 = inlined_call_operand.vmem [shape: bf16[2,16,128], index: 5, kind: input, shape index: {}]
  %s6 = inlined_call_operand.vmem [shape: bf16[128,512], index: 6, kind: input, shape index: {}]
  %s7 = inlined_call_operand.vmem [shape: f32[1,256], index: 7, kind: input, shape index: {}]
  %s8 = inlined_call_operand.vmem [shape: f32[1,256], index: 8, kind: input, shape index: {}]
  %s9 = inlined_call_operand.vmem [shape: bf16[256,128], index: 9, kind: input, shape index: {}]
  %s10 = inlined_call_operand.vmem [shape: f32[1,128], index: 10, kind: input, shape index: {}]
  %s11 = inlined_call_operand.hbm [shape: f32[2,128], index: 11, kind: output, shape index: {0}]
  %s12 = inlined_call_operand.vmem [shape: f32[2,256], index: 12, kind: output, shape index: {1}]
  %s13 = inlined_call_operand.vmem [shape: f32[2,16,128], index: 13, kind: output, shape index: {2}]
  %s14 = inlined_call_operand.vmem [shape: f32[2,16,128], index: 14, kind: output, shape index: {3}]
  %15 = xla_tuple %s11, %s12, %s13, %s14
  %s16 = sld [smem:[#allocation0]]
  $region78: #{cnn_gate_aspect_forward.1} parent=0
    _
  %s18 = ssub.s32 1, %s16
  %s19 = scalar_select 0, %s18, %s16
  $region1: #{cnn_gate_aspect_forward.1} parent=0
    #allocation2 [shape = 'u8[1024]{0}', space=vmem, size = 0x400, scoped, tag = 'output window, operand 0, single buffered']
    #allocation3 [shape = 's32[1]{0}', space=sflag, size = 0x4, scoped, tag = 'scoped memory for cnn_gate_aspect_forward.1']
    %20 = vsyncpa [#allocation3], 0
    // Predicated region
    $region2: #{cnn_gate_aspect_forward.1} parent=1 // pred_check
      _
    $region3: #{cnn_gate_aspect_forward.1} parent=1 // pred_check_branch
      %22 = sbr.rel (0) target = $region5
    $region4: #{cnn_gate_aspect_forward.1} parent=1 // pred_region
      _
    $region5: #{cnn_gate_aspect_forward.1} parent=1 // pred_fallthru
      _
    // Predicated region
    $region6: #{cnn_gate_aspect_forward.1} parent=1 // pred_check
      _
    $region7: #{cnn_gate_aspect_forward.1} parent=1 // pred_check_branch
      %24 = sbr.rel (0) target = $region9
    $region8: #{cnn_gate_aspect_forward.1} parent=1 // pred_region
      _
    $region9: #{cnn_gate_aspect_forward.1} parent=1 // pred_fallthru
      _
    // Predicated region
    $region10: #{cnn_gate_aspect_forward.1} parent=1 // pred_check
      _
    $region11: #{cnn_gate_aspect_forward.1} parent=1 // pred_check_branch
      %26 = sbr.rel (0) target = $region13
    $region12: #{cnn_gate_aspect_forward.1} parent=1 // pred_region
      _
    $region13: #{cnn_gate_aspect_forward.1} parent=1 // pred_fallthru
      _
    // Predicated region
    $region14: #{cnn_gate_aspect_forward.1} parent=1 // pred_check
      _
    $region15: #{cnn_gate_aspect_forward.1} parent=1 // pred_check_branch
      %28 = sbr.rel (0) target = $region17
    $region16: #{cnn_gate_aspect_forward.1} parent=1 // pred_region
      _
    $region17: #{cnn_gate_aspect_forward.1} parent=1 // pred_fallthru
      _
    // Predicated region
    $region18: #{cnn_gate_aspect_forward.1} parent=1 // pred_check
      _
    $region19: #{cnn_gate_aspect_forward.1} parent=1 // pred_check_branch
      %30 = sbr.rel (0) target = $region21
    $region20: #{cnn_gate_aspect_forward.1} parent=1 // pred_region
      _
    $region21: #{cnn_gate_aspect_forward.1} parent=1 // pred_fallthru
      _
    // Predicated region
    $region22: #{cnn_gate_aspect_forward.1} parent=1 // pred_check
      _
    $region23: #{cnn_gate_aspect_forward.1} parent=1 // pred_check_branch
      %32 = sbr.rel (0) target = $region25
    $region24: #{cnn_gate_aspect_forward.1} parent=1 // pred_region
      _
    $region25: #{cnn_gate_aspect_forward.1} parent=1 // pred_fallthru
      _
    // Predicated region
    $region26: #{cnn_gate_aspect_forward.1} parent=1 // pred_check
      _
    $region27: #{cnn_gate_aspect_forward.1} parent=1 // pred_check_branch
      %34 = sbr.rel (0) target = $region29
    $region28: #{cnn_gate_aspect_forward.1} parent=1 // pred_region
      _
    $region29: #{cnn_gate_aspect_forward.1} parent=1 // pred_fallthru
      _
    // Predicated region
    $region30: #{cnn_gate_aspect_forward.1} parent=1 // pred_check
      _
    $region31: #{cnn_gate_aspect_forward.1} parent=1 // pred_check_branch
      %36 = sbr.rel (0) target = $region33
    $region32: #{cnn_gate_aspect_forward.1} parent=1 // pred_region
      _
    $region33: #{cnn_gate_aspect_forward.1} parent=1 // pred_fallthru
      _
    // Predicated region
    $region34: #{cnn_gate_aspect_forward.1} parent=1 // pred_check
      _
    $region35: #{cnn_gate_aspect_forward.1} parent=1 // pred_check_branch
      %38 = sbr.rel (0) target = $region37
    $region36: #{cnn_gate_aspect_forward.1} parent=1 // pred_region
      _
    $region37: #{cnn_gate_aspect_forward.1} parent=1 // pred_fallthru
      _
    // Predicated region
    $region38: #{cnn_gate_aspect_forward.1} parent=1 // pred_check
      _
    $region39: #{cnn_gate_aspect_forward.1} parent=1 // pred_check_branch
      %40 = sbr.rel (0) target = $region41
    $region40: #{cnn_gate_aspect_forward.1} parent=1 // pred_region
      _
    $region41: #{cnn_gate_aspect_forward.1} parent=1 // pred_fallthru
      _
    // Predicated region
    $region42: #{cnn_gate_aspect_forward.1} parent=1 // pred_check
      _
    $region43: #{cnn_gate_aspect_forward.1} parent=1 // pred_check_branch
      %42 = sbr.rel (0) target = $region45
    $region44: #{cnn_gate_aspect_forward.1} parent=1 // pred_region
      _
    $region45: #{cnn_gate_aspect_forward.1} parent=1 // pred_fallthru
      _
    %v44 = vld [vmem:[%s0] sm:$0xf]
    %v45 = vld [vmem:[%s0 + $0x4] sm:$0xf]
    %v46 = vld [vmem:[%s0 + $0x8] sm:$0xf]
    %v47 = vld [vmem:[%s0 + $0xc] sm:$0xf]
    %v48 = vld [vmem:[%s1] sm:$0xf]
    %v49 = vld [vmem:[%s1 + $0x4] sm:$0xf]
    %v50 = vld [vmem:[%s1 + $0x8] sm:$0xf]
    %v51 = vld [vmem:[%s1 + $0xc] sm:$0xf]
    %v52 = vld [vmem:[%s1 + $0x10] sm:$0xf]
    %v53 = vld [vmem:[%s1 + $0x14] sm:$0xf]
    %v54 = vld [vmem:[%s1 + $0x18] sm:$0xf]
    %v55 = vld [vmem:[%s1 + $0x1c] sm:$0xf]
    %v56 = vld [vmem:[%s1 + $0x20] sm:$0xf]
    %v57 = vld [vmem:[%s1 + $0x24] sm:$0xf]
    %v58 = vld [vmem:[%s1 + $0x28] sm:$0xf]
    %v59 = vld [vmem:[%s1 + $0x2c] sm:$0xf]
    %v60 = vld [vmem:[%s1 + $0x30] sm:$0xf]
    %v61 = vld [vmem:[%s1 + $0x34] sm:$0xf]
    %v62 = vld [vmem:[%s1 + $0x38] sm:$0xf]
    %v63 = vld [vmem:[%s1 + $0x3c] sm:$0xf]
    %v68 = vunpack.c.l.b16 %v44
    %v69 = vunpack.c.l.b16 %v45
    %v70 = vunpack.c.l.b16 %v46
    %v71 = vunpack.c.l.b16 %v47
    %v72 = vpack.c.b16 %v69, %v68
    %v73 = vpack.c.b16 %v71, %v70
    %v92 = vunpack.c.l.b16 %v48
    %v93 = vunpack.c.l.b16 %v49
    %v94 = vunpack.c.l.b16 %v50
    %v95 = vunpack.c.l.b16 %v51
    %v96 = vunpack.c.l.b16 %v52
    %v97 = vunpack.c.l.b16 %v53
    %v98 = vunpack.c.l.b16 %v54
    %v99 = vunpack.c.l.b16 %v55
    %v100 = vunpack.c.l.b16 %v56
    %v101 = vunpack.c.l.b16 %v57
    %v102 = vunpack.c.l.b16 %v58
    %v103 = vunpack.c.l.b16 %v59
    %v104 = vunpack.c.l.b16 %v60
    %v105 = vunpack.c.l.b16 %v61
    %v106 = vunpack.c.l.b16 %v62
    %v107 = vunpack.c.l.b16 %v63
    %v108 = vpack.c.b16 %v93, %v92
    %v109 = vpack.c.b16 %v95, %v94
    %v110 = vpack.c.b16 %v97, %v96
    %v111 = vpack.c.b16 %v99, %v98
    %v112 = vpack.c.b16 %v101, %v100
    %v113 = vpack.c.b16 %v103, %v102
    %v114 = vpack.c.b16 %v105, %v104
    %v115 = vpack.c.b16 %v107, %v106
    %124 = vmatprep.subr.bf16.mxu0 0
    %125 = vmatpush1.bf16.msra.mxu0 %v108
    %126 = vmatprep.subr.bf16.mxu0 0
    %127 = vmatpush1.bf16.msra.mxu0 %v109
    %128 = vmatprep.subr.bf16.mxu0 0
    %129 = vmatpush1.bf16.msra.mxu0 %v110
    %130 = vmatprep.subr.bf16.mxu0 0
    %131 = vmatpush1.bf16.msra.mxu0 %v111
    %132 = vmatprep.subr.bf16.mxu0 0
    %133 = vmatpush1.bf16.msra.mxu0 %v112
    %134 = vmatprep.subr.bf16.mxu0 0
    %135 = vmatpush1.bf16.msra.mxu0 %v113
    %136 = vmatprep.subr.bf16.mxu0 0
    %137 = vmatpush1.bf16.msra.mxu0 %v114
    %138 = vmatprep.subr.bf16.mxu0 0
    %139 = vmatpush1.bf16.msra.mxu0 %v115
    %140 = vmatprep.subr.bf16.mxu0 0
    %141 = vmatpush1.bf16.msra.mxu0 0
    %142 = vmatprep.subr.bf16.mxu0 0
    %143 = vmatpush1.bf16.msra.mxu0 0
    %144 = vmatprep.subr.bf16.mxu0 0
    %145 = vmatpush1.bf16.msra.mxu0 0
    %146 = vmatprep.subr.bf16.mxu0 0
    %147 = vmatpush1.bf16.msra.mxu0 0
    %148 = vmatprep.subr.bf16.mxu0 0
    %149 = vmatpush1.bf16.msra.mxu0 0
    %150 = vmatprep.subr.bf16.mxu0 0
    %151 = vmatpush1.bf16.msra.mxu0 0
    %152 = vmatprep.subr.bf16.mxu0 0
    %153 = vmatpush1.bf16.msra.mxu0 0
    %154 = vmatprep.subr.bf16.mxu0 0
    %155 = vmatpush1.bf16.msra.mxu0 0
    %156 = vmatprep.mubr.bf16.mxu0 0
    %157 = vmatmul.mubr.bf16.gmra.mrb[0].mxu0 %v72
    %v158 = vpop.f32.mrb[0].mxu0
    %v159 = vadd.f32 0.0, %v158
    %v160 = vpop.f32.mrb[0].mxu0
    %v161 = vpop.f32.mrb[0].mxu0
    %v162 = vadd.f32 0.0, %v161
    %v163 = vpop.f32.mrb[0].mxu0
    %164 = vmatprep.mubr.bf16.mxu0 0
    %165 = vmatmul.mubr.bf16.gmra.mrb[0].mxu0 %v73
    %v166 = vpop.f32.mrb[0].mxu0
    %v167 = vadd.f32 0.0, %v166
    %v168 = vpop.f32.mrb[0].mxu0
    %v169 = vpop.f32.mrb[0].mxu0
    %v170 = vadd.f32 0.0, %v169
    %v171 = vpop.f32.mrb[0].mxu0
    %172 = vdwg.mxu0
    %v173 = vld [vmem:[%s2] sm:$0x1]
    %v175 = vlaneseq
    %v176 = vshrl.u32 %v175, 7
    %v177 = vsub.s32 0, %v176
    %v178 = vrot.slane %v173, %v177
    %v180 = vadd.f32 %v159, %v178
    %v181 = vadd.f32 %v162, %v178
    %v182 = vadd.f32 %v167, %v178
    %v183 = vadd.f32 %v170, %v178
    %v184 = vmax.f32 %v180, 0.0
    %v185 = vmax.f32 %v181, 0.0
    %v186 = vmax.f32 %v182, 0.0
    %v187 = vmax.f32 %v183, 0.0
    %v188 = vlaneseq
    %v189 = vshrl.u32 %v188, 7
    %v190 = vadd.s32 %v189, 8
    %vm191 = vcmp.lt.s32.totalorder %v189, 6
    %vm192 = vcmp.lt.s32.totalorder %v190, 6
    %v193 = vsel %vm191, %v184, -inf
    %v194 = vsel %vm192, %v185, -inf
    %v195 = vsel %vm191, %v186, -inf
    %v196 = vsel %vm192, %v187, -inf
    %v197 = vmax.f32 %v193, %v194
    %v198 = vrot.slane %v197, 4
    %v199 = vmax.f32 %v197, %v198
    %v200 = vrot.slane %v199, 2
    %v201 = vmax.f32 %v199, %v200
    %v202 = vrot.slane %v201, 1
    %v203 = vmax.f32 %v201, %v202
    %v204 = vmax.f32 %v195, %v196
    %v205 = vrot.slane %v204, 4
    %v206 = vmax.f32 %v204, %v205
    %v207 = vrot.slane %v206, 2
    %v208 = vmax.f32 %v206, %v207
    %v209 = vrot.slane %v208, 1
    %v210 = vmax.f32 %v208, %v209
    %v211 = vpack.c.bf16 %v203, %v203
    %v212 = vpack.c.bf16 %v210, %v210
    %v213 = vld [vmem:[%s3] sm:$0xf]
    %v214 = vld [vmem:[%s3 + $0x4] sm:$0xf]
    %v215 = vld [vmem:[%s3 + $0x8] sm:$0xf]
    %v216 = vld [vmem:[%s3 + $0xc] sm:$0xf]
    %v217 = vld [vmem:[%s3 + $0x10] sm:$0xf]
    %v218 = vld [vmem:[%s3 + $0x14] sm:$0xf]
    %v219 = vld [vmem:[%s3 + $0x18] sm:$0xf]
    %v220 = vld [vmem:[%s3 + $0x1c] sm:$0xf]
    %v221 = vld [vmem:[%s3 + $0x20] sm:$0xf]
    %v222 = vld [vmem:[%s3 + $0x24] sm:$0xf]
    %v223 = vld [vmem:[%s3 + $0x28] sm:$0xf]
    %v224 = vld [vmem:[%s3 + $0x2c] sm:$0xf]
    %v225 = vld [vmem:[%s3 + $0x30] sm:$0xf]
    %v226 = vld [vmem:[%s3 + $0x34] sm:$0xf]
    %v227 = vld [vmem:[%s3 + $0x38] sm:$0xf]
    %v228 = vld [vmem:[%s3 + $0x3c] sm:$0xf]
    %v229 = vld [vmem:[%s4] sm:$0x1]
    %v231 = vlaneseq
    %v232 = vshrl.u32 %v231, 7
    %v233 = vsub.s32 0, %v232
    %v234 = vrot.slane %v229, %v233
    %v238 = vunpack.c.l.b16 %v211
    %v239 = vunpack.c.l.b16 %v212
    %vm240 = vcmask 1041409
    %v241 = vsel %vm240, %v239, %v238
    %v242 = vpack.c.b16 %v241, %v241
    %v260 = vunpack.c.l.b16 %v213
    %v261 = vunpack.c.l.b16 %v214
    %v262 = vunpack.c.l.b16 %v215
    %v263 = vunpack.c.l.b16 %v216
    %v264 = vunpack.c.l.b16 %v217
    %v265 = vunpack.c.l.b16 %v218
    %v266 = vunpack.c.l.b16 %v219
    %v267 = vunpack.c.l.b16 %v220
    %v268 = vunpack.c.l.b16 %v221
    %v269 = vunpack.c.l.b16 %v222
    %v270 = vunpack.c.l.b16 %v223
    %v271 = vunpack.c.l.b16 %v224
    %v272 = vunpack.c.l.b16 %v225
    %v273 = vunpack.c.l.b16 %v226
    %v274 = vunpack.c.l.b16 %v227
    %v275 = vunpack.c.l.b16 %v228
    %v276 = vpack.c.b16 %v261, %v260
    %v277 = vpack.c.b16 %v263, %v262
    %v278 = vpack.c.b16 %v265, %v264
    %v279 = vpack.c.b16 %v267, %v266
    %v280 = vpack.c.b16 %v269, %v268
    %v281 = vpack.c.b16 %v271, %v270
    %v282 = vpack.c.b16 %v273, %v272
    %v283 = vpack.c.b16 %v275, %v274
    %292 = vmatprep.subr.bf16.mxu0 0
    %293 = vmatpush1.bf16.msra.mxu0 %v276
    %294 = vmatprep.subr.bf16.mxu0 0
    %295 = vmatpush1.bf16.msra.mxu0 %v277
    %296 = vmatprep.subr.bf16.mxu0 0
    %297 = vmatpush1.bf16.msra.mxu0 %v278
    %298 = vmatprep.subr.bf16.mxu0 0
    %299 = vmatpush1.bf16.msra.mxu0 %v279
    %300 = vmatprep.subr.bf16.mxu0 0
    %301 = vmatpush1.bf16.msra.mxu0 %v280
    %302 = vmatprep.subr.bf16.mxu0 0
    %303 = vmatpush1.bf16.msra.mxu0 %v281
    %304 = vmatprep.subr.bf16.mxu0 0
    %305 = vmatpush1.bf16.msra.mxu0 %v282
    %306 = vmatprep.subr.bf16.mxu0 0
    %307 = vmatpush1.bf16.msra.mxu0 %v283
    %308 = vmatprep.subr.bf16.mxu0 0
    %309 = vmatpush1.bf16.msra.mxu0 0
    %310 = vmatprep.subr.bf16.mxu0 0
    %311 = vmatpush1.bf16.msra.mxu0 0
    %312 = vmatprep.subr.bf16.mxu0 0
    %313 = vmatpush1.bf16.msra.mxu0 0
    %314 = vmatprep.subr.bf16.mxu0 0
    %315 = vmatpush1.bf16.msra.mxu0 0
    %316 = vmatprep.subr.bf16.mxu0 0
    %317 = vmatpush1.bf16.msra.mxu0 0
    %318 = vmatprep.subr.bf16.mxu0 0
    %319 = vmatpush1.bf16.msra.mxu0 0
    %320 = vmatprep.subr.bf16.mxu0 0
    %321 = vmatpush1.bf16.msra.mxu0 0
    %322 = vmatprep.subr.bf16.mxu0 0
    %323 = vmatpush1.bf16.msra.mxu0 0
    %324 = vmatprep.mubr.bf16.mxu0 0
    %325 = vmatmul.mubr.bf16.gmra.mrb[0].mxu0 %v242
    %v326 = vpop.f32.mrb[0].mxu0
    %v327 = vadd.f32 %v234, %v326
    %v328 = vpop.f32.mrb[0].mxu0
    %v329 = vpop.f32.mrb[0].mxu0
    %v330 = vpop.f32.mrb[0].mxu0
    %331 = vdwg.mxu0
    %v332 = vld [vmem:[%s5] sm:$0xf]
    %v333 = vld [vmem:[%s5 + $0x4] sm:$0xf]
    %v334 = vld [vmem:[%s5 + $0x8] sm:$0xf]
    %v335 = vld [vmem:[%s5 + $0xc] sm:$0xf]
    %v336 = vld [vmem:[%s6] sm:$0xff]
    %v337 = vld [vmem:[%s6 + $0x8] sm:$0xff]
    %v338 = vld [vmem:[%s6 + $0x10] sm:$0xff]
    %v339 = vld [vmem:[%s6 + $0x18] sm:$0xff]
    %v340 = vld [vmem:[%s6 + $0x20] sm:$0xff]
    %v341 = vld [vmem:[%s6 + $0x28] sm:$0xff]
    %v342 = vld [vmem:[%s6 + $0x30] sm:$0xff]
    %v343 = vld [vmem:[%s6 + $0x38] sm:$0xff]
    %v344 = vld [vmem:[%s6 + $0x40] sm:$0xff]
    %v345 = vld [vmem:[%s6 + $0x48] sm:$0xff]
    %v346 = vld [vmem:[%s6 + $0x50] sm:$0xff]
    %v347 = vld [vmem:[%s6 + $0x58] sm:$0xff]
    %v348 = vld [vmem:[%s6 + $0x60] sm:$0xff]
    %v349 = vld [vmem:[%s6 + $0x68] sm:$0xff]
    %v350 = vld [vmem:[%s6 + $0x70] sm:$0xff]
    %v351 = vld [vmem:[%s6 + $0x78] sm:$0xff]
    %v352 = vld [vmem:[%s6 + $0x80] sm:$0xff]
    %v353 = vld [vmem:[%s6 + $0x88] sm:$0xff]
    %v354 = vld [vmem:[%s6 + $0x90] sm:$0xff]
    %v355 = vld [vmem:[%s6 + $0x98] sm:$0xff]
    %v356 = vld [vmem:[%s6 + $0xa0] sm:$0xff]
    %v357 = vld [vmem:[%s6 + $0xa8] sm:$0xff]
    %v358 = vld [vmem:[%s6 + $0xb0] sm:$0xff]
    %v359 = vld [vmem:[%s6 + $0xb8] sm:$0xff]
    %v360 = vld [vmem:[%s6 + $0xc0] sm:$0xff]
    %v361 = vld [vmem:[%s6 + $0xc8] sm:$0xff]
    %v362 = vld [vmem:[%s6 + $0xd0] sm:$0xff]
    %v363 = vld [vmem:[%s6 + $0xd8] sm:$0xff]
    %v364 = vld [vmem:[%s6 + $0xe0] sm:$0xff]
    %v365 = vld [vmem:[%s6 + $0xe8] sm:$0xff]
    %v366 = vld [vmem:[%s6 + $0xf0] sm:$0xff]
    %v367 = vld [vmem:[%s6 + $0xf8] sm:$0xff]
    %v372 = vunpack.c.l.b16 %v332
    %v373 = vunpack.c.l.b16 %v333
    %v374 = vunpack.c.l.b16 %v334
    %v375 = vunpack.c.l.b16 %v335
    %v376 = vpack.c.b16 %v373, %v372
    %v377 = vpack.c.b16 %v375, %v374
    %v412 = vunpack.c.l.b16 %v336
    %v413 = vunpack.c.h.b16 %v336
    %v414 = vunpack.c.l.b16 %v337
    %v415 = vunpack.c.h.b16 %v337
    %v416 = vunpack.c.l.b16 %v338
    %v417 = vunpack.c.h.b16 %v338
    %v418 = vunpack.c.l.b16 %v339
    %v419 = vunpack.c.h.b16 %v339
    %v420 = vunpack.c.l.b16 %v340
    %v421 = vunpack.c.h.b16 %v340
    %v422 = vunpack.c.l.b16 %v341
    %v423 = vunpack.c.h.b16 %v341
    %v424 = vunpack.c.l.b16 %v342
    %v425 = vunpack.c.h.b16 %v342
    %v426 = vunpack.c.l.b16 %v343
    %v427 = vunpack.c.h.b16 %v343
    %v428 = vunpack.c.l.b16 %v344
    %v429 = vunpack.c.h.b16 %v344
    %v430 = vunpack.c.l.b16 %v345
    %v431 = vunpack.c.h.b16 %v345
    %v432 = vunpack.c.l.b16 %v346
    %v433 = vunpack.c.h.b16 %v346
    %v434 = vunpack.c.l.b16 %v347
    %v435 = vunpack.c.h.b16 %v347
    %v436 = vunpack.c.l.b16 %v348
    %v437 = vunpack.c.h.b16 %v348
    %v438 = vunpack.c.l.b16 %v349
    %v439 = vunpack.c.h.b16 %v349
    %v440 = vunpack.c.l.b16 %v350
    %v441 = vunpack.c.h.b16 %v350
    %v442 = vunpack.c.l.b16 %v351
    %v443 = vunpack.c.h.b16 %v351
    %v444 = vunpack.c.l.b16 %v352
    %v445 = vunpack.c.h.b16 %v352
    %v446 = vunpack.c.l.b16 %v353
    %v447 = vunpack.c.h.b16 %v353
    %v448 = vunpack.c.l.b16 %v354
    %v449 = vunpack.c.h.b16 %v354
    %v450 = vunpack.c.l.b16 %v355
    %v451 = vunpack.c.h.b16 %v355
    %v452 = vunpack.c.l.b16 %v356
    %v453 = vunpack.c.h.b16 %v356
    %v454 = vunpack.c.l.b16 %v357
    %v455 = vunpack.c.h.b16 %v357
    %v456 = vunpack.c.l.b16 %v358
    %v457 = vunpack.c.h.b16 %v358
    %v458 = vunpack.c.l.b16 %v359
    %v459 = vunpack.c.h.b16 %v359
    %v460 = vunpack.c.l.b16 %v360
    %v461 = vunpack.c.h.b16 %v360
    %v462 = vunpack.c.l.b16 %v361
    %v463 = vunpack.c.h.b16 %v361
    %v464 = vunpack.c.l.b16 %v362
    %v465 = vunpack.c.h.b16 %v362
    %v466 = vunpack.c.l.b16 %v363
    %v467 = vunpack.c.h.b16 %v363
    %v468 = vunpack.c.l.b16 %v364
    %v469 = vunpack.c.h.b16 %v364
    %v470 = vunpack.c.l.b16 %v365
    %v471 = vunpack.c.h.b16 %v365
    %v472 = vunpack.c.l.b16 %v366
    %v473 = vunpack.c.h.b16 %v366
    %v474 = vunpack.c.l.b16 %v367
    %v475 = vunpack.c.h.b16 %v367
    %v476 = vpack.c.b16 %v416, %v412
    %v477 = vpack.c.b16 %v417, %v413
    %v478 = vpack.c.b16 %v418, %v414
    %v479 = vpack.c.b16 %v419, %v415
    %v480 = vpack.c.b16 %v424, %v420
    %v481 = vpack.c.b16 %v425, %v421
    %v482 = vpack.c.b16 %v426, %v422
    %v483 = vpack.c.b16 %v427, %v423
    %v484 = vpack.c.b16 %v432, %v428
    %v485 = vpack.c.b16 %v433, %v429
    %v486 = vpack.c.b16 %v434, %v430
    %v487 = vpack.c.b16 %v435, %v431
    %v488 = vpack.c.b16 %v440, %v436
    %v489 = vpack.c.b16 %v441, %v437
    %v490 = vpack.c.b16 %v442, %v438
    %v491 = vpack.c.b16 %v443, %v439
    %v492 = vpack.c.b16 %v448, %v444
    %v493 = vpack.c.b16 %v449, %v445
    %v494 = vpack.c.b16 %v450, %v446
    %v495 = vpack.c.b16 %v451, %v447
    %v496 = vpack.c.b16 %v456, %v452
    %v497 = vpack.c.b16 %v457, %v453
    %v498 = vpack.c.b16 %v458, %v454
    %v499 = vpack.c.b16 %v459, %v455
    %v500 = vpack.c.b16 %v464, %v460
    %v501 = vpack.c.b16 %v465, %v461
    %v502 = vpack.c.b16 %v466, %v462
    %v503 = vpack.c.b16 %v467, %v463
    %v504 = vpack.c.b16 %v472, %v468
    %v505 = vpack.c.b16 %v473, %v469
    %v506 = vpack.c.b16 %v474, %v470
    %v507 = vpack.c.b16 %v475, %v471
    %540 = vmatprep.subr.bf16.mxu0 %v477
    %541 = vmatpush1.bf16.msra.mxu0 %v476
    %542 = vmatprep.subr.bf16.mxu0 %v481
    %543 = vmatpush1.bf16.msra.mxu0 %v480
    %544 = vmatprep.subr.bf16.mxu0 %v485
    %545 = vmatpush1.bf16.msra.mxu0 %v484
    %546 = vmatprep.subr.bf16.mxu0 %v489
    %547 = vmatpush1.bf16.msra.mxu0 %v488
    %548 = vmatprep.subr.bf16.mxu0 %v493
    %549 = vmatpush1.bf16.msra.mxu0 %v492
    %550 = vmatprep.subr.bf16.mxu0 %v497
    %551 = vmatpush1.bf16.msra.mxu0 %v496
    %552 = vmatprep.subr.bf16.mxu0 %v501
    %553 = vmatpush1.bf16.msra.mxu0 %v500
    %554 = vmatprep.subr.bf16.mxu0 %v505
    %555 = vmatpush1.bf16.msra.mxu0 %v504
    %556 = vmatprep.subr.bf16.mxu0 0
    %557 = vmatpush1.bf16.msra.mxu0 0
    %558 = vmatprep.subr.bf16.mxu0 0
    %559 = vmatpush1.bf16.msra.mxu0 0
    %560 = vmatprep.subr.bf16.mxu0 0
    %561 = vmatpush1.bf16.msra.mxu0 0
    %562 = vmatprep.subr.bf16.mxu0 0
    %563 = vmatpush1.bf16.msra.mxu0 0
    %564 = vmatprep.subr.bf16.mxu0 0
    %565 = vmatpush1.bf16.msra.mxu0 0
    %566 = vmatprep.subr.bf16.mxu0 0
    %567 = vmatpush1.bf16.msra.mxu0 0
    %568 = vmatprep.subr.bf16.mxu0 0
    %569 = vmatpush1.bf16.msra.mxu0 0
    %570 = vmatprep.subr.bf16.mxu0 0
    %571 = vmatpush1.bf16.msra.mxu0 0
    %572 = vmatprep.mubr.bf16.mxu0 0
    %573 = vmatmul.mubr.bf16.gmra.mrb[0].mxu0 %v376
    %v574 = vpop.f32.mrb[0].mxu0
    %v575 = vadd.f32 0.0, %v574
    %v576 = vpop.f32.mrb[0].mxu0
    %v577 = vadd.f32 0.0, %v576
    %v578 = vpop.f32.mrb[0].mxu0
    %v579 = vadd.f32 0.0, %v578
    %v580 = vpop.f32.mrb[0].mxu0
    %v581 = vadd.f32 0.0, %v580
    %582 = vmatprep.mubr.bf16.mxu0 0
    %583 = vmatmul.mubr.bf16.gmra.mrb[0].mxu0 %v377
    %v584 = vpop.f32.mrb[0].mxu0
    %v585 = vadd.f32 0.0, %v584
    %v586 = vpop.f32.mrb[0].mxu0
    %v587 = vadd.f32 0.0, %v586
    %v588 = vpop.f32.mrb[0].mxu0
    %v589 = vadd.f32 0.0, %v588
    %v590 = vpop.f32.mrb[0].mxu0
    %v591 = vadd.f32 0.0, %v590
    %592 = vdwg.mxu0
    %593 = vmatprep.subr.bf16.mxu0 %v479
    %594 = vmatpush1.bf16.msra.mxu0 %v478
    %595 = vmatprep.subr.bf16.mxu0 %v483
    %596 = vmatpush1.bf16.msra.mxu0 %v482
    %597 = vmatprep.subr.bf16.mxu0 %v487
    %598 = vmatpush1.bf16.msra.mxu0 %v486
    %599 = vmatprep.subr.bf16.mxu0 %v491
    %600 = vmatpush1.bf16.msra.mxu0 %v490
    %601 = vmatprep.subr.bf16.mxu0 %v495
    %602 = vmatpush1.bf16.msra.mxu0 %v494
    %603 = vmatprep.subr.bf16.mxu0 %v499
    %604 = vmatpush1.bf16.msra.mxu0 %v498
    %605 = vmatprep.subr.bf16.mxu0 %v503
    %606 = vmatpush1.bf16.msra.mxu0 %v502
    %607 = vmatprep.subr.bf16.mxu0 %v507
    %608 = vmatpush1.bf16.msra.mxu0 %v506
    %609 = vmatprep.subr.bf16.mxu0 0
    %610 = vmatpush1.bf16.msra.mxu0 0
    %611 = vmatprep.subr.bf16.mxu0 0
    %612 = vmatpush1.bf16.msra.mxu0 0
    %613 = vmatprep.subr.bf16.mxu0 0
    %614 = vmatpush1.bf16.msra.mxu0 0
    %615 = vmatprep.subr.bf16.mxu0 0
    %616 = vmatpush1.bf16.msra.mxu0 0
    %617 = vmatprep.subr.bf16.mxu0 0
    %618 = vmatpush1.bf16.msra.mxu0 0
    %619 = vmatprep.subr.bf16.mxu0 0
    %620 = vmatpush1.bf16.msra.mxu0 0
    %621 = vmatprep.subr.bf16.mxu0 0
    %622 = vmatpush1.bf16.msra.mxu0 0
    %623 = vmatprep.subr.bf16.mxu0 0
    %624 = vmatpush1.bf16.msra.mxu0 0
    %625 = vmatprep.mubr.bf16.mxu0 0
    %626 = vmatmul.mubr.bf16.gmra.mrb[0].mxu0 %v376
    %v627 = vpop.f32.mrb[0].mxu0
    %v628 = vadd.f32 0.0, %v627
    %v629 = vpop.f32.mrb[0].mxu0
    %v630 = vadd.f32 0.0, %v629
    %v631 = vpop.f32.mrb[0].mxu0
    %v632 = vadd.f32 0.0, %v631
    %v633 = vpop.f32.mrb[0].mxu0
    %v634 = vadd.f32 0.0, %v633
    %635 = vmatprep.mubr.bf16.mxu0 0
    %636 = vmatmul.mubr.bf16.gmra.mrb[0].mxu0 %v377
    %v637 = vpop.f32.mrb[0].mxu0
    %v638 = vadd.f32 0.0, %v637
    %v639 = vpop.f32.mrb[0].mxu0
    %v640 = vadd.f32 0.0, %v639
    %v641 = vpop.f32.mrb[0].mxu0
    %v642 = vadd.f32 0.0, %v641
    %v643 = vpop.f32.mrb[0].mxu0
    %v644 = vadd.f32 0.0, %v643
    %645 = vdwg.mxu0
    %v646 = vld [vmem:[%s7] sm:$0x1]
    %v647 = vld [vmem:[%s8] sm:$0x1]
    %v649 = vlaneseq
    %v650 = vshrl.u32 %v649, 7
    %v651 = vsub.s32 0, %v650
    %v652 = vrot.slane %v647, %v651
    %v654 = vadd.f32 %v327, %v652
    %v657 = vunpack.c.l.s4 1966171168
    %v658 = vunpack.c.0.s8 %v657
    %v659 = vlaneseq
    %v660 = vshrl.u32 %v659, 7
    %v661 = vsub.s32 %v658, %v660
    %v662 = vrot.slane %v654, %v661
    %v663 = vcombine.high %v662, %v662
    %v665 = vunpack.c.l.s4 1966171168
    %v666 = vunpack.c.0.s8 %v665
    %v667 = vlaneseq
    %v668 = vshrl.u32 %v667, 7
    %v669 = vsub.s32 %v666, %v668
    %v670 = vrot.slane %v662, %v669
    %v672 = vunpack.c.l.s4 1966171168
    %v673 = vunpack.c.0.s8 %v672
    %v674 = vlaneseq
    %v675 = vshrl.u32 %v674, 7
    %v676 = vsub.s32 %v673, %v675
    %v677 = vrot.slane %v663, %v676
    %v679 = vlaneseq
    %v680 = vshrl.u32 %v679, 7
    %v681 = vsub.s32 0, %v680
    %v682 = vrot.slane %v646, %v681
    %v684 = vadd.f32 %v575, %v682
    %v685 = vadd.f32 %v579, %v682
    %v686 = vadd.f32 %v585, %v682
    %v687 = vadd.f32 %v589, %v682
    %v688 = vtanh.pop %v684
    %v689 = vtanh.pop %v685
    %v690 = vtanh.pop %v686
    %v691 = vtanh.pop %v687
    %v692 = vlaneseq
    %v693 = vshrl.u32 %v692, 7
    %v694 = vsub.s32 0, %v693
    %v695 = vrot.slane %v670, %v694
    %v696 = vlaneseq
    %v697 = vshrl.u32 %v696, 7
    %v698 = vsub.s32 0, %v697
    %v699 = vrot.slane %v677, %v698
    %v702 = vadd.f32 %v577, %v695
    %v703 = vadd.f32 %v581, %v695
    %v704 = vadd.f32 %v587, %v699
    %v705 = vadd.f32 %v591, %v699
    %v706 = vmax.f32 %v702, 0.0
    %v707 = vmax.f32 %v703, 0.0
    %v708 = vmax.f32 %v704, 0.0
    %v709 = vmax.f32 %v705, 0.0
    %710 = vst [vmem:[%s13] sm:$0xff] %v706
    %711 = vst [vmem:[%s13 + $0x8] sm:$0xff] %v707
    %712 = vst [vmem:[%s13 + $0x10] sm:$0xff] %v708
    %713 = vst [vmem:[%s13 + $0x18] sm:$0xff] %v709
    %vm714 = vcmp.lt.s32.totalorder %v189, 14
    %vm715 = vcmp.lt.s32.totalorder %v190, 14
    %v716 = vmul.f32 %v688, %v706
    %v717 = vmul.f32 %v689, %v707
    %v718 = vmul.f32 %v690, %v708
    %v719 = vmul.f32 %v691, %v709
    %v720 = vsel %vm714, %v716, -inf
    %v721 = vsel %vm715, %v717, -inf
    %v722 = vsel %vm714, %v718, -inf
    %v723 = vsel %vm715, %v719, -inf
    %v724 = vmax.f32 %v720, %v721
    %v725 = vrot.slane %v724, 4
    %v726 = vmax.f32 %v724, %v725
    %v727 = vrot.slane %v726, 2
    %v728 = vmax.f32 %v726, %v727
    %v729 = vrot.slane %v728, 1
    %v730 = vmax.f32 %v728, %v729
    %v731 = vmax.f32 %v722, %v723
    %v732 = vrot.slane %v731, 4
    %v733 = vmax.f32 %v731, %v732
    %v734 = vrot.slane %v733, 2
    %v735 = vmax.f32 %v733, %v734
    %v736 = vrot.slane %v735, 1
    %v737 = vmax.f32 %v735, %v736
    %v738 = vld [vmem:[%s7 + $0x1] sm:$0x1]
    %v739 = vld [vmem:[%s8 + $0x1] sm:$0x1]
    %v741 = vlaneseq
    %v742 = vshrl.u32 %v741, 7
    %v743 = vsub.s32 0, %v742
    %v744 = vrot.slane %v739, %v743
    %v746 = vadd.f32 %v327, %v744
    %v749 = vunpack.c.l.s4 1966171168
    %v750 = vunpack.c.0.s8 %v749
    %v751 = vlaneseq
    %v752 = vshrl.u32 %v751, 7
    %v753 = vsub.s32 %v750, %v752
    %v754 = vrot.slane %v746, %v753
    %v755 = vcombine.high %v754, %v754
    %v757 = vunpack.c.l.s4 1966171168
    %v758 = vunpack.c.0.s8 %v757
    %v759 = vlaneseq
    %v760 = vshrl.u32 %v759, 7
    %v761 = vsub.s32 %v758, %v760
    %v762 = vrot.slane %v754, %v761
    %v764 = vunpack.c.l.s4 1966171168
    %v765 = vunpack.c.0.s8 %v764
    %v766 = vlaneseq
    %v767 = vshrl.u32 %v766, 7
    %v768 = vsub.s32 %v765, %v767
    %v769 = vrot.slane %v755, %v768
    %v771 = vlaneseq
    %v772 = vshrl.u32 %v771, 7
    %v773 = vsub.s32 0, %v772
    %v774 = vrot.slane %v738, %v773
    %v776 = vadd.f32 %v628, %v774
    %v777 = vadd.f32 %v632, %v774
    %v778 = vadd.f32 %v638, %v774
    %v779 = vadd.f32 %v642, %v774
    %v780 = vtanh.pop %v776
    %v781 = vtanh.pop %v777
    %v782 = vtanh.pop %v778
    %v783 = vtanh.pop %v779
    %v784 = vlaneseq
    %v785 = vshrl.u32 %v784, 7
    %v786 = vsub.s32 0, %v785
    %v787 = vrot.slane %v762, %v786
    %v788 = vlaneseq
    %v789 = vshrl.u32 %v788, 7
    %v790 = vsub.s32 0, %v789
    %v791 = vrot.slane %v769, %v790
    %v794 = vadd.f32 %v630, %v787
    %v795 = vadd.f32 %v634, %v787
    %v796 = vadd.f32 %v640, %v791
    %v797 = vadd.f32 %v644, %v791
    %v798 = vmax.f32 %v794, 0.0
    %v799 = vmax.f32 %v795, 0.0
    %v800 = vmax.f32 %v796, 0.0
    %v801 = vmax.f32 %v797, 0.0
    %802 = vst [vmem:[%s14] sm:$0xff] %v798
    %803 = vst [vmem:[%s14 + $0x8] sm:$0xff] %v799
    %804 = vst [vmem:[%s14 + $0x10] sm:$0xff] %v800
    %805 = vst [vmem:[%s14 + $0x18] sm:$0xff] %v801
    %vm806 = vcmp.lt.s32.totalorder %v189, 13
    %vm807 = vcmp.lt.s32.totalorder %v190, 13
    %v808 = vmul.f32 %v780, %v798
    %v809 = vmul.f32 %v781, %v799
    %v810 = vmul.f32 %v782, %v800
    %v811 = vmul.f32 %v783, %v801
    %v812 = vsel %vm806, %v808, -inf
    %v813 = vsel %vm807, %v809, -inf
    %v814 = vsel %vm806, %v810, -inf
    %v815 = vsel %vm807, %v811, -inf
    %v816 = vmax.f32 %v812, %v813
    %v817 = vrot.slane %v816, 4
    %v818 = vmax.f32 %v816, %v817
    %v819 = vrot.slane %v818, 2
    %v820 = vmax.f32 %v818, %v819
    %v821 = vrot.slane %v820, 1
    %v822 = vmax.f32 %v820, %v821
    %v823 = vmax.f32 %v814, %v815
    %v824 = vrot.slane %v823, 4
    %v825 = vmax.f32 %v823, %v824
    %v826 = vrot.slane %v825, 2
    %v827 = vmax.f32 %v825, %v826
    %v828 = vrot.slane %v827, 1
    %v829 = vmax.f32 %v827, %v828
    %v832 = vsel %vm240, %v737, %v730
    %v836 = vsel %vm240, %v829, %v822
    %v838 = vcombine.low %v832, %v836
    %v840 = vunpack.c.l.s4 1983009808
    %v841 = vunpack.c.0.s8 %v840
    %v842 = vlaneseq
    %v843 = vshrl.u32 %v842, 7
    %v844 = vsub.s32 %v841, %v843
    %v845 = vrot.slane %v838, %v844
    %847 = vst [vmem:[%s12] sm:$0xf] %v845
    %v848 = vpack.c.bf16 %v832, %v832
    %v849 = vpack.c.bf16 %v836, %v836
    %v850 = vld [vmem:[%s9] sm:$0xf]
    %v851 = vld [vmem:[%s9 + $0x4] sm:$0xf]
    %v852 = vld [vmem:[%s9 + $0x8] sm:$0xf]
    %v853 = vld [vmem:[%s9 + $0xc] sm:$0xf]
    %v854 = vld [vmem:[%s9 + $0x10] sm:$0xf]
    %v855 = vld [vmem:[%s9 + $0x14] sm:$0xf]
    %v856 = vld [vmem:[%s9 + $0x18] sm:$0xf]
    %v857 = vld [vmem:[%s9 + $0x1c] sm:$0xf]
    %v858 = vld [vmem:[%s9 + $0x20] sm:$0xf]
    %v859 = vld [vmem:[%s9 + $0x24] sm:$0xf]
    %v860 = vld [vmem:[%s9 + $0x28] sm:$0xf]
    %v861 = vld [vmem:[%s9 + $0x2c] sm:$0xf]
    %v862 = vld [vmem:[%s9 + $0x30] sm:$0xf]
    %v863 = vld [vmem:[%s9 + $0x34] sm:$0xf]
    %v864 = vld [vmem:[%s9 + $0x38] sm:$0xf]
    %v865 = vld [vmem:[%s9 + $0x3c] sm:$0xf]
    %v866 = vld [vmem:[%s9 + $0x40] sm:$0xf]
    %v867 = vld [vmem:[%s9 + $0x44] sm:$0xf]
    %v868 = vld [vmem:[%s9 + $0x48] sm:$0xf]
    %v869 = vld [vmem:[%s9 + $0x4c] sm:$0xf]
    %v870 = vld [vmem:[%s9 + $0x50] sm:$0xf]
    %v871 = vld [vmem:[%s9 + $0x54] sm:$0xf]
    %v872 = vld [vmem:[%s9 + $0x58] sm:$0xf]
    %v873 = vld [vmem:[%s9 + $0x5c] sm:$0xf]
    %v874 = vld [vmem:[%s9 + $0x60] sm:$0xf]
    %v875 = vld [vmem:[%s9 + $0x64] sm:$0xf]
    %v876 = vld [vmem:[%s9 + $0x68] sm:$0xf]
    %v877 = vld [vmem:[%s9 + $0x6c] sm:$0xf]
    %v878 = vld [vmem:[%s9 + $0x70] sm:$0xf]
    %v879 = vld [vmem:[%s9 + $0x74] sm:$0xf]
    %v880 = vld [vmem:[%s9 + $0x78] sm:$0xf]
    %v881 = vld [vmem:[%s9 + $0x7c] sm:$0xf]
    %v882 = vld [vmem:[%s10] sm:$0x1]
    %v884 = vlaneseq
    %v885 = vshrl.u32 %v884, 7
    %v886 = vsub.s32 0, %v885
    %v887 = vrot.slane %v882, %v886
    %v921 = vunpack.c.l.b16 %v850
    %v922 = vunpack.c.l.b16 %v851
    %v923 = vunpack.c.l.b16 %v852
    %v924 = vunpack.c.l.b16 %v853
    %v925 = vunpack.c.l.b16 %v854
    %v926 = vunpack.c.l.b16 %v855
    %v927 = vunpack.c.l.b16 %v856
    %v928 = vunpack.c.l.b16 %v857
    %v929 = vunpack.c.l.b16 %v858
    %v930 = vunpack.c.l.b16 %v859
    %v931 = vunpack.c.l.b16 %v860
    %v932 = vunpack.c.l.b16 %v861
    %v933 = vunpack.c.l.b16 %v862
    %v934 = vunpack.c.l.b16 %v863
    %v935 = vunpack.c.l.b16 %v864
    %v936 = vunpack.c.l.b16 %v865
    %v937 = vunpack.c.l.b16 %v866
    %v938 = vunpack.c.l.b16 %v867
    %v939 = vunpack.c.l.b16 %v868
    %v940 = vunpack.c.l.b16 %v869
    %v941 = vunpack.c.l.b16 %v870
    %v942 = vunpack.c.l.b16 %v871
    %v943 = vunpack.c.l.b16 %v872
    %v944 = vunpack.c.l.b16 %v873
    %v945 = vunpack.c.l.b16 %v874
    %v946 = vunpack.c.l.b16 %v875
    %v947 = vunpack.c.l.b16 %v876
    %v948 = vunpack.c.l.b16 %v877
    %v949 = vunpack.c.l.b16 %v878
    %v950 = vunpack.c.l.b16 %v879
    %v951 = vunpack.c.l.b16 %v880
    %v952 = vunpack.c.l.b16 %v881
    %v953 = vpack.c.b16 %v922, %v921
    %v954 = vpack.c.b16 %v924, %v923
    %v955 = vpack.c.b16 %v926, %v925
    %v956 = vpack.c.b16 %v928, %v927
    %v957 = vpack.c.b16 %v930, %v929
    %v958 = vpack.c.b16 %v932, %v931
    %v959 = vpack.c.b16 %v934, %v933
    %v960 = vpack.c.b16 %v936, %v935
    %v961 = vpack.c.b16 %v938, %v937
    %v962 = vpack.c.b16 %v940, %v939
    %v963 = vpack.c.b16 %v942, %v941
    %v964 = vpack.c.b16 %v944, %v943
    %v965 = vpack.c.b16 %v946, %v945
    %v966 = vpack.c.b16 %v948, %v947
    %v967 = vpack.c.b16 %v950, %v949
    %v968 = vpack.c.b16 %v952, %v951
    %985 = vmatprep.subr.bf16.mxu0 0
    %986 = vmatpush1.bf16.msra.mxu0 %v953
    %987 = vmatprep.subr.bf16.mxu0 0
    %988 = vmatpush1.bf16.msra.mxu0 %v954
    %989 = vmatprep.subr.bf16.mxu0 0
    %990 = vmatpush1.bf16.msra.mxu0 %v955
    %991 = vmatprep.subr.bf16.mxu0 0
    %992 = vmatpush1.bf16.msra.mxu0 %v956
    %993 = vmatprep.subr.bf16.mxu0 0
    %994 = vmatpush1.bf16.msra.mxu0 %v957
    %995 = vmatprep.subr.bf16.mxu0 0
    %996 = vmatpush1.bf16.msra.mxu0 %v958
    %997 = vmatprep.subr.bf16.mxu0 0
    %998 = vmatpush1.bf16.msra.mxu0 %v959
    %999 = vmatprep.subr.bf16.mxu0 0
    %1000 = vmatpush1.bf16.msra.mxu0 %v960
    %1001 = vmatprep.subr.bf16.mxu0 0
    %1002 = vmatpush1.bf16.msra.mxu0 %v961
    %1003 = vmatprep.subr.bf16.mxu0 0
    %1004 = vmatpush1.bf16.msra.mxu0 %v962
    %1005 = vmatprep.subr.bf16.mxu0 0
    %1006 = vmatpush1.bf16.msra.mxu0 %v963
    %1007 = vmatprep.subr.bf16.mxu0 0
    %1008 = vmatpush1.bf16.msra.mxu0 %v964
    %1009 = vmatprep.subr.bf16.mxu0 0
    %1010 = vmatpush1.bf16.msra.mxu0 %v965
    %1011 = vmatprep.subr.bf16.mxu0 0
    %1012 = vmatpush1.bf16.msra.mxu0 %v966
    %1013 = vmatprep.subr.bf16.mxu0 0
    %1014 = vmatpush1.bf16.msra.mxu0 %v967
    %1015 = vmatprep.subr.bf16.mxu0 0
    %1016 = vmatpush1.bf16.msra.mxu0 %v968
    %1017 = vmatprep.mubr.bf16.mxu0 %v849
    %1018 = vmatmul.mubr.bf16.gmra.mrb[0].mxu0 %v848
    %v1019 = vpop.f32.mrb[0].mxu0
    %v1020 = vadd.f32 %v887, %v1019
    %v1021 = vpop.f32.mrb[0].mxu0
    %v1022 = vpop.f32.mrb[0].mxu0
    %v1023 = vpop.f32.mrb[0].mxu0
    %1024 = vdwg.mxu0
    %1025 = vst [vmem:[#allocation2] sm:$0x3] %v1020
    // Predicated region
    $region46: #{cnn_gate_aspect_forward.1} parent=1 // pred_check
      _
    $region47: #{cnn_gate_aspect_forward.1} parent=1 // pred_check_branch
      %1027 = sbr.rel (0) target = $region49
    $region48: #{cnn_gate_aspect_forward.1} parent=1 // pred_region
      %s1029 = ssub.s32 32, 32
      %1030 = vsyncadd [#allocation3], %s1029
      %s1032 = sshll.u32 [#allocation2], 4
      %s1033 = int_to_ptr.vmem [resolvable:$true] %s1032
      %1035 = dma.vmem_to_hbm [thread:$0]  %s1033, 32, %s11, [#allocation3]
    $region49: #{cnn_gate_aspect_forward.1} parent=1 // pred_fallthru
      _
    // Predicated region
    $region50: #{cnn_gate_aspect_forward.1} parent=1 // pred_check
      _
    $region51: #{cnn_gate_aspect_forward.1} parent=1 // pred_check_branch
      %1037 = sbr.rel (0) target = $region53
    $region52: #{cnn_gate_aspect_forward.1} parent=1 // pred_region
      _
    $region53: #{cnn_gate_aspect_forward.1} parent=1 // pred_fallthru
      _
    // Predicated region
    $region54: #{cnn_gate_aspect_forward.1} parent=1 // pred_check
      _
    $region55: #{cnn_gate_aspect_forward.1} parent=1 // pred_check_branch
      %1039 = sbr.rel (0) target = $region57
    $region56: #{cnn_gate_aspect_forward.1} parent=1 // pred_region
      _
    $region57: #{cnn_gate_aspect_forward.1} parent=1 // pred_fallthru
      _
    // Predicated region
    $region58: #{cnn_gate_aspect_forward.1} parent=1 // pred_check
      _
    $region59: #{cnn_gate_aspect_forward.1} parent=1 // pred_check_branch
      %1041 = sbr.rel (0) target = $region61
    $region60: #{cnn_gate_aspect_forward.1} parent=1 // pred_region
      _
    $region61: #{cnn_gate_aspect_forward.1} parent=1 // pred_fallthru
      _
    // Predicated region
    $region62: #{cnn_gate_aspect_forward.1} parent=1 // pred_check
      _
    $region63: #{cnn_gate_aspect_forward.1} parent=1 // pred_check_branch
      %1043 = sbr.rel (0) target = $region65
    $region64: #{cnn_gate_aspect_forward.1} parent=1 // pred_region
      %1044 = dma.done [#allocation3], 32
    $region65: #{cnn_gate_aspect_forward.1} parent=1 // pred_fallthru
      _
    // Predicated region
    $region66: #{cnn_gate_aspect_forward.1} parent=1 // pred_check
      _
    $region67: #{cnn_gate_aspect_forward.1} parent=1 // pred_check_branch
      %1046 = sbr.rel (0) target = $region69
    $region68: #{cnn_gate_aspect_forward.1} parent=1 // pred_region
      _
    $region69: #{cnn_gate_aspect_forward.1} parent=1 // pred_fallthru
      _
    // Predicated region
    $region70: #{cnn_gate_aspect_forward.1} parent=1 // pred_check
      _
    $region71: #{cnn_gate_aspect_forward.1} parent=1 // pred_check_branch
      %1048 = sbr.rel (0) target = $region73
    $region72: #{cnn_gate_aspect_forward.1} parent=1 // pred_region
      _
    $region73: #{cnn_gate_aspect_forward.1} parent=1 // pred_fallthru
      _
    // Predicated region
    $region74: #{cnn_gate_aspect_forward.1} parent=1 // pred_check
      _
    $region75: #{cnn_gate_aspect_forward.1} parent=1 // pred_check_branch
      %1050 = sbr.rel (0) target = $region77
    $region76: #{cnn_gate_aspect_forward.1} parent=1 // pred_region
      _
    $region77: #{cnn_gate_aspect_forward.1} parent=1 // pred_fallthru
      _
    %1051 = vsyncpa [#allocation3], 1

</llo_original>
